<compile_context>
chip_gen: v7x
topology: tpu7x:2x2x1
jax: 0.10.0
libtpu: 0.0.40
codegen_flags: <defaults>
</compile_context>

<pallas_src>
import math

import jax
import jax.numpy as jnp
from jax.experimental import pallas as pl
from jax.experimental.pallas import tpu as pltpu

LANE = 128

# Double-buffered VMEM budget for the pipelined blocks (n inputs + 1 output),
# with an explicit scoped-VMEM limit.  24 MiB blocks / 32 MiB limit fits every
# generation (v5e/v6e: 128 MiB physical VMEM, v7x: 64 MiB per TC).
_VMEM_BLOCK_BUDGET = 24 * 1024 * 1024
_VMEM_LIMIT_BYTES = 32 * 1024 * 1024


def _sublane(dtype):
    """Sublane alignment for non-full second-minor blocks (dtype packing aware)."""
    return max(8, 32 // max(jnp.dtype(dtype).itemsize, 1))   # f32:8, bf16:16, int8/fp8:32


def _round_up(x, m):
    return ((x + m - 1) // m) * m


def _round_down_at_least(x, m):
    return max((x // m) * m, m)


def _make_index_map(ndim, blocked_axes):
    """index_map over len(blocked_axes) grid dims; every other dim uses block 0.

    Accepts (and ignores) the trailing scalar-prefetch ref arguments.
    """
    n_grid = len(blocked_axes)

    def index_map(*args):
        gidx = args[:n_grid]
        out = [0] * ndim
        for ax, g in zip(blocked_axes, gidx):
            out[ax] = g
        return tuple(out)

    return index_map


def _choose_blocking(shape, n, dtype):
    """Tile the ORIGINAL array dims (no reshape / relayout of the operands).

    Only the leading dim and, when a single leading slab overflows the VMEM
    budget, the second-minor dim are blocked; the minor (lane) dim and middle
    dims stay at full extent, which always satisfies the "(8,128)-divisible or
    full" rule.  Guarantees >= 2 grid blocks whenever there is enough work so
    both v7x TensorCores get used.
    """
    k = len(shape)
    itemsize = jnp.dtype(dtype).itemsize
    sub = _sublane(dtype)
    per_elem_bytes = (n + 1) * 2 * itemsize            # all operands, double-buffered
    budget_elems = max(_VMEM_BLOCK_BUDGET // per_elem_bytes, sub * LANE)

    if k == 1:
        m = shape[0]
        tb = min(m, max(LANE, (budget_elems // LANE) * LANE))
        if tb >= m and m >= 2 * LANE:                  # keep both v7x TCs busy
            tb = _round_up(pl.cdiv(m, 2), LANE)
        return (pl.cdiv(m, tb),), (tb,), _make_index_map(1, (0,))

    if k == 2:
        r, c = shape
        tb = min(r, _round_down_at_least(budget_elems // max(c, 1), sub))
        if tb >= r and r >= 2 * sub:                   # keep both v7x TCs busy
            tb = _round_up(pl.cdiv(r, 2), sub)
        return (pl.cdiv(r, tb),), (tb, c), _make_index_map(2, (0,))

    # k >= 3: grid over (leading axis, second-minor axis).
    lead, sec, last = shape[0], shape[-2], shape[-1]
    mid = math.prod(shape[1:-2])
    slab_elems = mid * sec * last                      # one leading-axis slice

    if slab_elems <= budget_elems:
        tb0 = max(1, min(lead, budget_elems // slab_elems))
        tb_sec = sec                                   # second-minor stays full
    else:                                              # single slab too big -> block it too
        tb0 = 1
        if sec > sub:
            tb_sec = min(sec, _round_down_at_least(budget_elems // max(mid * last, 1), sub))
        else:
            tb_sec = sec

    g0, g1 = pl.cdiv(lead, tb0), pl.cdiv(sec, tb_sec)
    if g0 * g1 == 1:                                   # v7x megacore: split if enough work
        if lead >= 2:
            tb0 = pl.cdiv(lead, 2)
            g0 = pl.cdiv(lead, tb0)
        elif sec >= 2 * sub:
            tb_sec = _round_up(pl.cdiv(sec, 2), sub)
            g1 = pl.cdiv(sec, tb_sec)

    block = (tb0,) + tuple(shape[1:-2]) + (tb_sec, last)
    return (g0, g1), block, _make_index_map(k, (0, k - 2))


def _sel_kernel(coef_ref, *refs):
    """refs = (x_ref_0, ..., x_ref_{n-1}, o_ref).

    coef_ref : SMEM f32[n] (scalar prefetch), coef[i] = gw[i] * (1 - sw[i])
    x_ref_i  : VMEM input block
    o_ref    : VMEM output block
    """
    x_refs, o_ref = refs[:-1], refs[-1]
    # Keep the accumulate chain fused: n vld + (2n-1) VALU ops + 1 vst per vreg.
    acc = coef_ref[0] * x_refs[0][...].astype(jnp.float32)
    for i in range(1, len(x_refs)):                    # n is small & static -> unrolled
        acc = acc + coef_ref[i] * x_refs[i][...].astype(jnp.float32)
    o_ref[...] = acc.astype(o_ref.dtype)


def sel_forward(group_weights, suppression_weights, inputs):
    """Pallas implementation of SEL.forward(*inputs)."""
    inputs = list(inputs)
    if not inputs:
        raise ValueError("SEL needs at least one input")
    shape, in_dtype = inputs[0].shape, inputs[0].dtype
    for x in inputs:
        if x.shape != shape or x.dtype != in_dtype:
            raise ValueError("all SEL inputs must share the same shape and dtype")

    # zip(gw, inputs, sw) in the PyTorch module consumes only the first min(...) channels.
    n_used = min(len(inputs), group_weights.shape[0], suppression_weights.shape[0])
    inputs = inputs[:n_used]

    # ---- parameter glue (O(in_channels) scalars, plain JAX) ----
    # Softmax over the FULL parameter vectors (matches the module), then fuse
    # each channel into a single coefficient.
    gw = jax.nn.softmax(group_weights.astype(jnp.float32))
    sw = jax.nn.softmax(suppression_weights.astype(jnp.float32))
    coef = (gw[:n_used] * (1.0 - sw[:n_used])).astype(jnp.float32)   # (n_used,)

    out_dtype = jnp.result_type(group_weights.dtype, suppression_weights.dtype, in_dtype)
    numel = math.prod(shape)

    grid, block, index_map = _choose_blocking(shape, n_used, in_dtype)
    tile_spec = pl.BlockSpec(block, index_map)

    return pl.pallas_call(
        _sel_kernel,
        out_shape=jax.ShapeDtypeStruct(shape, out_dtype),
        grid_spec=pltpu.PrefetchScalarGridSpec(
            num_scalar_prefetch=1,
            grid=grid,
            in_specs=[tile_spec] * n_used,
            out_specs=tile_spec,
        ),
        compiler_params=pltpu.CompilerParams(
            dimension_semantics=("parallel",) * len(grid),
            vmem_limit_bytes=_VMEM_LIMIT_BYTES,
        ),
        cost_estimate=pl.CostEstimate(
            flops=2 * n_used * numel,
            transcendentals=0,
            bytes_accessed=numel * (n_used * jnp.dtype(in_dtype).itemsize
                                    + jnp.dtype(out_dtype).itemsize),
        ),
    )(coef, *inputs)


def _reference(group_weights, suppression_weights, inputs):
    gw = jax.nn.softmax(group_weights.astype(jnp.float32))
    sw = jax.nn.softmax(suppression_weights.astype(jnp.float32))
    return sum(gw[i] * inp * (1.0 - sw[i]) for i, inp in enumerate(inputs))


if __name__ == "__main__":
    key = jax.random.PRNGKey(0)

    in_channels = 4          # number of parallel inputs the SEL fuses
    B, C, H, W = 2, 4, 16, 16

    keys = jax.random.split(key, in_channels)
    inputs = [jax.random.normal(k, (B, C, H, W), jnp.float32) for k in keys]

    # nn.Parameter(torch.ones(in_channels)) -- deterministic init, matches module
    group_weights = jnp.ones((in_channels,), jnp.float32)
    suppression_weights = jnp.ones((in_channels,), jnp.float32)

    out = jax.block_until_ready(sel_forward(group_weights, suppression_weights, inputs))
    ref = _reference(group_weights, suppression_weights, inputs)
    assert out.shape == (B, C, H, W)
    assert jnp.allclose(out, ref, atol=1e-5, rtol=1e-5), "mismatch vs reference"

    # lane/sublane-unaligned shape: handled by Pallas masked partial blocks,
    # with no host-side pad/slice copies.
    keys2 = jax.random.split(jax.random.PRNGKey(1), in_channels)
    inputs2 = [jax.random.normal(k, (2, 3, 5, 7), jnp.float32) for k in keys2]
    out2 = jax.block_until_ready(
        sel_forward(group_weights, suppression_weights, inputs2))
    ref2 = _reference(group_weights, suppression_weights, inputs2)
    assert out2.shape == (2, 3, 5, 7)
    assert jnp.allclose(out2, ref2, atol=1e-5, rtol=1e-5), "mismatch (unaligned)"

    # bf16 inputs: exercises dtype-aware sublane alignment; output promotes to
    # float32 (matching torch promotion against float32 parameters).
    inputs3 = [x.astype(jnp.bfloat16) for x in inputs]
    out3 = jax.block_until_ready(
        sel_forward(group_weights, suppression_weights, inputs3))
    ref3 = _reference(group_weights, suppression_weights, inputs3)
    assert out3.dtype == jnp.float32
    assert jnp.allclose(out3, ref3, atol=1e-4, rtol=1e-3), "mismatch (bf16)"

    print("KERNEL_OK")
</pallas_src>

<mosaic_0001>
module attributes {stable_mosaic.version = 11 : i64} {
  func.func @_sel_kernel(%arg0: i32, %arg1: i32, %arg2: memref<4xf32, #tpu.memory_space<smem>>, %arg3: memref<1x4x16x16xf32, #tpu.memory_space<vmem>>, %arg4: memref<1x4x16x16xf32, #tpu.memory_space<vmem>>, %arg5: memref<1x4x16x16xf32, #tpu.memory_space<vmem>>, %arg6: memref<1x4x16x16xf32, #tpu.memory_space<vmem>>, %arg7: memref<1x4x16x16xf32, #tpu.memory_space<vmem>>) attributes {dimension_semantics = [#tpu.dimension_semantics<parallel>, #tpu.dimension_semantics<parallel>], iteration_bounds = array<i64: 2, 1>, scalar_prefetch = 1 : i64, scratch_operands = 0 : i64, tpu.core_type = #tpu.core_type<tc>, window_params = [{transform_indices = @transform_0, window_bounds = array<i64: 1, 4, 16, 16>}, {transform_indices = @transform_1, window_bounds = array<i64: 1, 4, 16, 16>}, {transform_indices = @transform_2, window_bounds = array<i64: 1, 4, 16, 16>}, {transform_indices = @transform_3, window_bounds = array<i64: 1, 4, 16, 16>}, {transform_indices = @transform_4, window_bounds = array<i64: 1, 4, 16, 16>}]} {
    %c0 = arith.constant 0 : index
    %0 = memref.load %arg2[%c0] : memref<4xf32, #tpu.memory_space<smem>>
    %c0_0 = arith.constant 0 : index
    %c0_1 = arith.constant 0 : index
    %c0_2 = arith.constant 0 : index
    %c0_3 = arith.constant 0 : index
    %1 = vector.load %arg3[%c0_0, %c0_1, %c0_2, %c0_3] : memref<1x4x16x16xf32, #tpu.memory_space<vmem>>, vector<1x4x16x16xf32>
    %2 = vector.broadcast %0 : f32 to vector<1x4x16x16xf32>
    %3 = arith.mulf %2, %1 : vector<1x4x16x16xf32>
    %c1 = arith.constant 1 : index
    %4 = memref.load %arg2[%c1] : memref<4xf32, #tpu.memory_space<smem>>
    %c0_4 = arith.constant 0 : index
    %c0_5 = arith.constant 0 : index
    %c0_6 = arith.constant 0 : index
    %c0_7 = arith.constant 0 : index
    %5 = vector.load %arg4[%c0_4, %c0_5, %c0_6, %c0_7] : memref<1x4x16x16xf32, #tpu.memory_space<vmem>>, vector<1x4x16x16xf32>
    %6 = vector.broadcast %4 : f32 to vector<1x4x16x16xf32>
    %7 = arith.mulf %6, %5 : vector<1x4x16x16xf32>
    %8 = arith.addf %3, %7 : vector<1x4x16x16xf32>
    %c2 = arith.constant 2 : index
    %9 = memref.load %arg2[%c2] : memref<4xf32, #tpu.memory_space<smem>>
    %c0_8 = arith.constant 0 : index
    %c0_9 = arith.constant 0 : index
    %c0_10 = arith.constant 0 : index
    %c0_11 = arith.constant 0 : index
    %10 = vector.load %arg5[%c0_8, %c0_9, %c0_10, %c0_11] : memref<1x4x16x16xf32, #tpu.memory_space<vmem>>, vector<1x4x16x16xf32>
    %11 = vector.broadcast %9 : f32 to vector<1x4x16x16xf32>
    %12 = arith.mulf %11, %10 : vector<1x4x16x16xf32>
    %13 = arith.addf %8, %12 : vector<1x4x16x16xf32>
    %c3 = arith.constant 3 : index
    %14 = memref.load %arg2[%c3] : memref<4xf32, #tpu.memory_space<smem>>
    %c0_12 = arith.constant 0 : index
    %c0_13 = arith.constant 0 : index
    %c0_14 = arith.constant 0 : index
    %c0_15 = arith.constant 0 : index
    %15 = vector.load %arg6[%c0_12, %c0_13, %c0_14, %c0_15] : memref<1x4x16x16xf32, #tpu.memory_space<vmem>>, vector<1x4x16x16xf32>
    %16 = vector.broadcast %14 : f32 to vector<1x4x16x16xf32>
    %17 = arith.mulf %16, %15 : vector<1x4x16x16xf32>
    %18 = arith.addf %13, %17 : vector<1x4x16x16xf32>
    %c0_16 = arith.constant 0 : index
    %c0_17 = arith.constant 0 : index
    %c0_18 = arith.constant 0 : index
    %c0_19 = arith.constant 0 : index
    %19 = vector.load %arg7[%c0_16, %c0_17, %c0_18, %c0_19] : memref<1x4x16x16xf32, #tpu.memory_space<vmem>>, vector<1x4x16x16xf32>
    tpu.vector_store %arg7[%c0_16, %c0_17, %c0_18, %c0_19], %18 {strides = array<i32>} : memref<1x4x16x16xf32, #tpu.memory_space<vmem>>, vector<1x4x16x16xf32>,
    return
  }
  func.func @transform_0(%arg0: i32, %arg1: i32, %arg2: memref<4xf32, #tpu.memory_space<smem>>) -> (i32, i32, i32, i32) {
    %c0_i32 = arith.constant 0 : i32
    %c0_i32_0 = arith.constant 0 : i32
    %c0_i32_1 = arith.constant 0 : i32
    return %arg0, %c0_i32, %arg1, %c0_i32_0 : i32, i32, i32, i32
  }
  func.func @transform_1(%arg0: i32, %arg1: i32, %arg2: memref<4xf32, #tpu.memory_space<smem>>) -> (i32, i32, i32, i32) {
    %c0_i32 = arith.constant 0 : i32
    %c0_i32_0 = arith.constant 0 : i32
    %c0_i32_1 = arith.constant 0 : i32
    return %arg0, %c0_i32, %arg1, %c0_i32_0 : i32, i32, i32, i32
  }
  func.func @transform_2(%arg0: i32, %arg1: i32, %arg2: memref<4xf32, #tpu.memory_space<smem>>) -> (i32, i32, i32, i32) {
    %c0_i32 = arith.constant 0 : i32
    %c0_i32_0 = arith.constant 0 : i32
    %c0_i32_1 = arith.constant 0 : i32
    return %arg0, %c0_i32, %arg1, %c0_i32_0 : i32, i32, i32, i32
  }
  func.func @transform_3(%arg0: i32, %arg1: i32, %arg2: memref<4xf32, #tpu.memory_space<smem>>) -> (i32, i32, i32, i32) {
    %c0_i32 = arith.constant 0 : i32
    %c0_i32_0 = arith.constant 0 : i32
    %c0_i32_1 = arith.constant 0 : i32
    return %arg0, %c0_i32, %arg1, %c0_i32_0 : i32, i32, i32, i32
  }
  func.func @transform_4(%arg0: i32, %arg1: i32, %arg2: memref<4xf32, #tpu.memory_space<smem>>) -> (i32, i32, i32, i32) {
    %c0_i32 = arith.constant 0 : i32
    %c0_i32_0 = arith.constant 0 : i32
    %c0_i32_1 = arith.constant 0 : i32
    return %arg0, %c0_i32, %arg1, %c0_i32_0 : i32, i32, i32, i32
  }
}

</mosaic_0001>

<llo_original>
// kernel: tpu_custom_call.1
$region0: #{tpu_custom_call.1}
  #allocation0 [shape = 'u32[]', space=smem, size = 0x4, offset = 0x4, fixed_abs, tag = 'smem constant byte address 0x4 - core index']
  #allocation1 [shape = 'u32[144,128]{1,0:T(1,128)}', space=vmem, size = 0x12000, scoped, tag = 'internal scratch']
  #allocation2 [shape = 's32[1]{0}', space=sflag, size = 0x4, scoped, tag = 'scoped memory for tpu_custom_call.1']
  #allocation3 [shape = 'u8[512]{0}', space=smem, size = 0x200, scoped, tag = 'prefetched SMEM operand 0']
  %s0 = inlined_call_operand.hbm [shape: f32[4], index: 0, kind: input, shape index: {}]
  %s1 = inlined_call_operand.hbm [shape: f32[2,4,16,16], index: 1, kind: input, shape index: {}]
  %s2 = inlined_call_operand.hbm [shape: f32[2,4,16,16], index: 2, kind: input, shape index: {}]
  %s3 = inlined_call_operand.hbm [shape: f32[2,4,16,16], index: 3, kind: input, shape index: {}]
  %s4 = inlined_call_operand.hbm [shape: f32[2,4,16,16], index: 4, kind: input, shape index: {}]
  %s5 = inlined_call_operand.hbm [shape: f32[2,4,16,16], index: 5, kind: output, shape index: {}]
  %s6 = sld [smem:[#allocation0]]
  $region65: #{tpu_custom_call.1} parent=0
    _
  %s8 = ssub.s32 1, %s6
  %s9 = scalar_select 0, %s8, %s6
  %11 = dma.hbm_to_smem %s0, 16, [#allocation3], [#allocation2]
  %12 = dma.done [#allocation2], 16
  %13 = sfence
  $region1: #{tpu_custom_call.1} parent=0
    #allocation4 [shape = 'u8[65536]{0}', space=vmem, size = 0x10000, scoped, tag = 'input window, operand 1']
    #allocation5 [shape = 's32[2]{0}', space=sflag, size = 0x8, scoped, tag = 'scoped memory for tpu_custom_call.1']
    #allocation6 [shape = 's32[2]{0}', space=sflag, size = 0x8, scoped, tag = 'scoped memory for tpu_custom_call.1']
    #allocation7 [shape = 'u8[65536]{0}', space=vmem, size = 0x10000, scoped, tag = 'input window, operand 2']
    #allocation8 [shape = 's32[2]{0}', space=sflag, size = 0x8, scoped, tag = 'scoped memory for tpu_custom_call.1']
    #allocation9 [shape = 'u8[65536]{0}', space=vmem, size = 0x10000, scoped, tag = 'input window, operand 3']
    #allocation10 [shape = 'u8[65536]{0}', space=vmem, size = 0x10000, scoped, tag = 'input window, operand 4']
    #allocation11 [shape = 's32[2]{0}', space=sflag, size = 0x8, scoped, tag = 'scoped memory for tpu_custom_call.1']
    #allocation12 [shape = 'u8[65536]{0}', space=vmem, size = 0x10000, scoped, tag = 'output window, operand 0']
    %14 = vsyncpa [#allocation5], 0
    %s15 = scalar_lea.sflag [#allocation5], 1
    %16 = vsyncpa %s15, 0
    %17 = vsyncpa [#allocation8], 0
    %s18 = scalar_lea.sflag [#allocation8], 1
    %19 = vsyncpa %s18, 0
    %20 = vsyncpa [#allocation11], 0
    %s21 = scalar_lea.sflag [#allocation11], 1
    %22 = vsyncpa %s21, 0
    %23 = vsyncpa [#allocation6], 0
    %s24 = scalar_lea.sflag [#allocation6], 1
    %25 = vsyncpa %s24, 0
    loop: start=0, step=1, limit=4
    $region2: #{tpu_custom_call.1} parent=1 // loop_pre_header
      _
    $region3: #{tpu_custom_call.1} parent=1 // loop_header
      %s27 = sphi 0, %s31
      %p28 = scmp.ge.s32.totalorder %s27, 4
      %s34 = sphi 0, %s46
      %s35 = sphi 0, %s42
      %s36 = sphi 0, %s34
      %s37 = sphi 0, %s35
      %s38 = sphi 0, %s36
      %s39 = sphi 0, %s37
      %s51 = sphi 0, %s53
      %s54 = sphi 0, %s51
      %s55 = sphi 0, %s54
      %s71 = sphi 0, %s55
      %s79 = sphi 0, %s81
      %s82 = sphi 0, %s79
      %s83 = sphi 0, %s82
      %s99 = sphi 0, %s83
      %s107 = sphi 0, %s109
      %s110 = sphi 0, %s107
      %s111 = sphi 0, %s110
      %s127 = sphi 0, %s111
      %s135 = sphi 0, %s137
      %s138 = sphi 0, %s135
      %s139 = sphi 0, %s138
      %s155 = sphi 0, %s139
      %s163 = sphi 0, %s165
      %s166 = sphi 0, %s163
      %s167 = sphi 0, %s166
      %s183 = sphi 0, %s167
    $region4: #{tpu_custom_call.1} parent=1 // loop_header_branch
      %30 = sbr.rel (%p28) target = $region8
    $region5: #{tpu_custom_call.1} parent=1 // loop_body
      %s32 = ssub.s32 %s27, 1
      %s33 = ssub.s32 %s27, 2
      %s40 = sadd.s32 1, %s35
      %p41 = scmp.ge.s32.totalorder %s40, 1
      %s42 = scalar_select %p41, 0, %s40
      %s43 = sadd.s32 1, %s34
      %s44 = scalar_select %p41, %s43, %s34
      %p45 = scmp.ge.s32.totalorder %s44, 2
      %s46 = scalar_select %p45, 0, %s44
      %s47 = ssub.s32 %s34, %s46
      %s48 = ssub.s32 %s35, %s42
      %s49 = sor.u32 %s47, %s48
      %p50 = scmp.eq.s32.totalorder %s49, 0
      %s52 = sadd.s32 %s51, 1
      %s53 = scalar_select %p50, %s51, %s52
      %p56 = pneg %p50
      %p57 = scmp.eq.s32.totalorder %s27, 1
      %p58 = por %p56, %p57
      %p59 = scmp.ne.s32.totalorder %s51, %s54
      %p60 = scmp.eq.s32.totalorder %s27, 0
      %p61 = por %p59, %p60
      %p62 = scmp.ne.s32.totalorder %s51, %s54
      %p63 = scmp.eq.s32.totalorder %s32, 1
      %p64 = por %p62, %p63
      %p65 = scmp.ne.s32.totalorder %s54, %s55
      %p66 = scmp.eq.s32.totalorder %s32, 0
      %p67 = por %p65, %p66
      %p68 = scmp.ne.s32.totalorder %s54, %s55
      %p69 = scmp.eq.s32.totalorder %s33, 1
      %p70 = por %p68, %p69
      %p72 = scmp.ne.s32.totalorder %s55, %s71
      %p73 = scmp.eq.s32.totalorder %s33, 0
      %p74 = por %p72, %p73
      %s75 = ssub.s32 %s34, %s46
      %s76 = ssub.s32 %s35, %s42
      %s77 = sor.u32 %s75, %s76
      %p78 = scmp.eq.s32.totalorder %s77, 0
      %s80 = sadd.s32 %s79, 1
      %s81 = scalar_select %p78, %s79, %s80
      %p84 = pneg %p78
      %p85 = scmp.eq.s32.totalorder %s27, 1
      %p86 = por %p84, %p85
      %p87 = scmp.ne.s32.totalorder %s79, %s82
      %p88 = scmp.eq.s32.totalorder %s27, 0
      %p89 = por %p87, %p88
      %p90 = scmp.ne.s32.totalorder %s79, %s82
      %p91 = scmp.eq.s32.totalorder %s32, 1
      %p92 = por %p90, %p91
      %p93 = scmp.ne.s32.totalorder %s82, %s83
      %p94 = scmp.eq.s32.totalorder %s32, 0
      %p95 = por %p93, %p94
      %p96 = scmp.ne.s32.totalorder %s82, %s83
      %p97 = scmp.eq.s32.totalorder %s33, 1
      %p98 = por %p96, %p97
      %p100 = scmp.ne.s32.totalorder %s83, %s99
      %p101 = scmp.eq.s32.totalorder %s33, 0
      %p102 = por %p100, %p101
      %s103 = ssub.s32 %s34, %s46
      %s104 = ssub.s32 %s35, %s42
      %s105 = sor.u32 %s103, %s104
      %p106 = scmp.eq.s32.totalorder %s105, 0
      %s108 = sadd.s32 %s107, 1
      %s109 = scalar_select %p106, %s107, %s108
      %p112 = pneg %p106
      %p113 = scmp.eq.s32.totalorder %s27, 1
      %p114 = por %p112, %p113
      %p115 = scmp.ne.s32.totalorder %s107, %s110
      %p116 = scmp.eq.s32.totalorder %s27, 0
      %p117 = por %p115, %p116
      %p118 = scmp.ne.s32.totalorder %s107, %s110
      %p119 = scmp.eq.s32.totalorder %s32, 1
      %p120 = por %p118, %p119
      %p121 = scmp.ne.s32.totalorder %s110, %s111
      %p122 = scmp.eq.s32.totalorder %s32, 0
      %p123 = por %p121, %p122
      %p124 = scmp.ne.s32.totalorder %s110, %s111
      %p125 = scmp.eq.s32.totalorder %s33, 1
      %p126 = por %p124, %p125
      %p128 = scmp.ne.s32.totalorder %s111, %s127
      %p129 = scmp.eq.s32.totalorder %s33, 0
      %p130 = por %p128, %p129
      %s131 = ssub.s32 %s34, %s46
      %s132 = ssub.s32 %s35, %s42
      %s133 = sor.u32 %s131, %s132
      %p134 = scmp.eq.s32.totalorder %s133, 0
      %s136 = sadd.s32 %s135, 1
      %s137 = scalar_select %p134, %s135, %s136
      %p140 = pneg %p134
      %p141 = scmp.eq.s32.totalorder %s27, 1
      %p142 = por %p140, %p141
      %p143 = scmp.ne.s32.totalorder %s135, %s138
      %p144 = scmp.eq.s32.totalorder %s27, 0
      %p145 = por %p143, %p144
      %p146 = scmp.ne.s32.totalorder %s135, %s138
      %p147 = scmp.eq.s32.totalorder %s32, 1
      %p148 = por %p146, %p147
      %p149 = scmp.ne.s32.totalorder %s138, %s139
      %p150 = scmp.eq.s32.totalorder %s32, 0
      %p151 = por %p149, %p150
      %p152 = scmp.ne.s32.totalorder %s138, %s139
      %p153 = scmp.eq.s32.totalorder %s33, 1
      %p154 = por %p152, %p153
      %p156 = scmp.ne.s32.totalorder %s139, %s155
      %p157 = scmp.eq.s32.totalorder %s33, 0
      %p158 = por %p156, %p157
      %s159 = ssub.s32 %s34, %s46
      %s160 = ssub.s32 %s35, %s42
      %s161 = sor.u32 %s159, %s160
      %p162 = scmp.eq.s32.totalorder %s161, 0
      %s164 = sadd.s32 %s163, 1
      %s165 = scalar_select %p162, %s163, %s164
      %p168 = pneg %p162
      %p169 = scmp.eq.s32.totalorder %s27, 1
      %p170 = por %p168, %p169
      %p171 = scmp.ne.s32.totalorder %s163, %s166
      %p172 = scmp.eq.s32.totalorder %s27, 0
      %p173 = por %p171, %p172
      %p174 = scmp.ne.s32.totalorder %s163, %s166
      %p175 = scmp.eq.s32.totalorder %s32, 1
      %p176 = por %p174, %p175
      %p177 = scmp.ne.s32.totalorder %s166, %s167
      %p178 = scmp.eq.s32.totalorder %s32, 0
      %p179 = por %p177, %p178
      %p180 = scmp.ne.s32.totalorder %s166, %s167
      %p181 = scmp.eq.s32.totalorder %s33, 1
      %p182 = por %p180, %p181
      %p184 = scmp.ne.s32.totalorder %s167, %s183
      %p185 = scmp.eq.s32.totalorder %s33, 0
      %p186 = por %p184, %p185
      %p187 = scmp.le.s32.totalorder 1, %s27
      %p188 = scmp.lt.s32.totalorder %s27, 3
      %p189 = pnand %p187, %p188
      %p190 = pneg %p189
      // Predicated region
      $region9: #{tpu_custom_call.1} parent=5 // pred_check
        _
      $region10: #{tpu_custom_call.1} parent=5 // pred_check_branch
        %192 = sbr.rel (%p189) target = $region12
      $region11: #{tpu_custom_call.1} parent=5 // pred_region
        %s193 = ssub.s32 %s27, 1
      $region12: #{tpu_custom_call.1} parent=5 // pred_fallthru
        _
      %p194 = scmp.lt.s32.totalorder %s27, 2
      // Predicated region
      $region13: #{tpu_custom_call.1} parent=5 // pred_check
        %p195 = pneg %p194
      $region14: #{tpu_custom_call.1} parent=5 // pred_check_branch
        %197 = sbr.rel (%p195) target = $region16
      $region15: #{tpu_custom_call.1} parent=5 // pred_region
        // Predicated region
        $region17: #{tpu_custom_call.1} parent=15 // pred_check
          %p198 = pneg %p61
        $region18: #{tpu_custom_call.1} parent=15 // pred_check_branch
          %200 = sbr.rel (%p198) target = $region20
        $region19: #{tpu_custom_call.1} parent=15 // pred_region
          %s201 = sand.u32 %s51, 1
          %s202 = scalar_lea.sflag [#allocation5], %s201
          %s203 = sand.u32 %s51, 1
          %s204 = smul.addr %s203, 64
          %s205 = scalar_lea.vmem [#allocation4], %s204
          %s206 = smul.u32 2, %s35
          %s208 = ssub.s32 1024, 1024
          %209 = vsyncadd %s202, %s208
          %s210 = smul.addr %s34, 8
          %s211 = sadd.s32 %s206, %s210
          %s212 = smul.addr %s211, 128
          %s213 = scalar_lea.hbm %s1, %s212
          %s214 = sshll.u32 %s205, 4
          %s215 = int_to_ptr.vmem [resolvable:$true] %s214
          %220 = dma.hbm_to_vmem [thread:$0]  %s213, 1024, %s215, %s202, 128, 128, 8
        $region20: #{tpu_custom_call.1} parent=15 // pred_fallthru
          _
        // Predicated region
        $region21: #{tpu_custom_call.1} parent=15 // pred_check
          %p221 = pneg %p89
        $region22: #{tpu_custom_call.1} parent=15 // pred_check_branch
          %223 = sbr.rel (%p221) target = $region24
        $region23: #{tpu_custom_call.1} parent=15 // pred_region
          %s224 = sand.u32 %s27, 1
          %s225 = scalar_lea.sflag [#allocation8], %s224
          %s226 = sand.u32 %s79, 1
          %s227 = smul.addr %s226, 64
          %s228 = scalar_lea.vmem [#allocation7], %s227
          %s229 = smul.u32 2, %s35
          %s231 = ssub.s32 1024, 1024
          %232 = vsyncadd %s225, %s231
          %s233 = smul.addr %s34, 8
          %s234 = sadd.s32 %s229, %s233
          %s235 = smul.addr %s234, 128
          %s236 = scalar_lea.hbm %s2, %s235
          %s237 = sshll.u32 %s228, 4
          %s238 = int_to_ptr.vmem [resolvable:$true] %s237
          %243 = dma.hbm_to_vmem [thread:$0]  %s236, 1024, %s238, %s225, 128, 128, 8
        $region24: #{tpu_custom_call.1} parent=15 // pred_fallthru
          _
        // Predicated region
        $region25: #{tpu_custom_call.1} parent=15 // pred_check
          %p244 = pneg %p117
        $region26: #{tpu_custom_call.1} parent=15 // pred_check_branch
          %246 = sbr.rel (%p244) target = $region28
        $region27: #{tpu_custom_call.1} parent=15 // pred_region
          %s247 = sand.u32 %s27, 1
          %s248 = scalar_lea.sflag [#allocation8], %s247
          %s249 = sand.u32 %s107, 1
          %s250 = smul.addr %s249, 64
          %s251 = scalar_lea.vmem [#allocation9], %s250
          %s252 = smul.u32 2, %s35
          %s254 = ssub.s32 1024, 1024
          %255 = vsyncadd %s248, %s254
          %s256 = smul.addr %s34, 8
          %s257 = sadd.s32 %s252, %s256
          %s258 = smul.addr %s257, 128
          %s259 = scalar_lea.hbm %s3, %s258
          %s260 = sshll.u32 %s251, 4
          %s261 = int_to_ptr.vmem [resolvable:$true] %s260
          %266 = dma.hbm_to_vmem [thread:$0]  %s259, 1024, %s261, %s248, 128, 128, 8
        $region28: #{tpu_custom_call.1} parent=15 // pred_fallthru
          _
        // Predicated region
        $region29: #{tpu_custom_call.1} parent=15 // pred_check
          %p267 = pneg %p145
        $region30: #{tpu_custom_call.1} parent=15 // pred_check_branch
          %269 = sbr.rel (%p267) target = $region32
        $region31: #{tpu_custom_call.1} parent=15 // pred_region
          %s270 = sand.u32 %s135, 1
          %s271 = scalar_lea.sflag [#allocation11], %s270
          %s272 = sand.u32 %s135, 1
          %s273 = smul.addr %s272, 64
          %s274 = scalar_lea.vmem [#allocation10], %s273
          %s275 = smul.u32 2, %s35
          %s277 = ssub.s32 1024, 1024
          %278 = vsyncadd %s271, %s277
          %s279 = smul.addr %s34, 8
          %s280 = sadd.s32 %s275, %s279
          %s281 = smul.addr %s280, 128
          %s282 = scalar_lea.hbm %s4, %s281
          %s283 = sshll.u32 %s274, 4
          %s284 = int_to_ptr.vmem [resolvable:$true] %s283
          %289 = dma.hbm_to_vmem [thread:$0]  %s282, 1024, %s284, %s271, 128, 128, 8
        $region32: #{tpu_custom_call.1} parent=15 // pred_fallthru
          _
      $region16: #{tpu_custom_call.1} parent=5 // pred_fallthru
        _
      %p290 = scmp.le.s32.totalorder 1, %s27
      %p291 = scmp.lt.s32.totalorder %s27, 3
      %p292 = pnand %p290, %p291
      %p293 = pneg %p292
      // Predicated region
      $region33: #{tpu_custom_call.1} parent=5 // pred_check
        _
      $region34: #{tpu_custom_call.1} parent=5 // pred_check_branch
        %295 = sbr.rel (%p292) target = $region36
      $region35: #{tpu_custom_call.1} parent=5 // pred_region
        %s296 = ssub.s32 %s27, 1
        %s297 = sand.u32 %s54, 1
        %s298 = scalar_lea.sflag [#allocation5], %s297
        %s299 = sand.u32 %s54, 1
        %s300 = smul.addr %s299, 64
        %s301 = scalar_lea.vmem [#allocation4], %s300
        // Predicated region
        $region37: #{tpu_custom_call.1} parent=35 // pred_check
          %p302 = pneg %p67
        $region38: #{tpu_custom_call.1} parent=35 // pred_check_branch
          %304 = sbr.rel (%p302) target = $region40
        $region39: #{tpu_custom_call.1} parent=35 // pred_region
          %305 = dma.done %s298, 1024
        $region40: #{tpu_custom_call.1} parent=35 // pred_fallthru
          _
        %s306 = sand.u32 %s32, 1
        %s307 = scalar_lea.sflag [#allocation8], %s306
        %s308 = sand.u32 %s82, 1
        %s309 = smul.addr %s308, 64
        %s310 = scalar_lea.vmem [#allocation7], %s309
        // Predicated region
        $region41: #{tpu_custom_call.1} parent=35 // pred_check
          %p311 = pneg %p95
        $region42: #{tpu_custom_call.1} parent=35 // pred_check_branch
          %313 = sbr.rel (%p311) target = $region44
        $region43: #{tpu_custom_call.1} parent=35 // pred_region
          %314 = dma.done %s307, 1024
        $region44: #{tpu_custom_call.1} parent=35 // pred_fallthru
          _
        %s315 = sand.u32 %s32, 1
        %s316 = scalar_lea.sflag [#allocation8], %s315
        %s317 = sand.u32 %s110, 1
        %s318 = smul.addr %s317, 64
        %s319 = scalar_lea.vmem [#allocation9], %s318
        // Predicated region
        $region45: #{tpu_custom_call.1} parent=35 // pred_check
          %p320 = pneg %p123
        $region46: #{tpu_custom_call.1} parent=35 // pred_check_branch
          %322 = sbr.rel (%p320) target = $region48
        $region47: #{tpu_custom_call.1} parent=35 // pred_region
          %323 = dma.done %s316, 1024
        $region48: #{tpu_custom_call.1} parent=35 // pred_fallthru
          _
        %s324 = sand.u32 %s138, 1
        %s325 = scalar_lea.sflag [#allocation11], %s324
        %s326 = sand.u32 %s138, 1
        %s327 = smul.addr %s326, 64
        %s328 = scalar_lea.vmem [#allocation10], %s327
        // Predicated region
        $region49: #{tpu_custom_call.1} parent=35 // pred_check
          %p329 = pneg %p151
        $region50: #{tpu_custom_call.1} parent=35 // pred_check_branch
          %331 = sbr.rel (%p329) target = $region52
        $region51: #{tpu_custom_call.1} parent=35 // pred_region
          %332 = dma.done %s325, 1024
        $region52: #{tpu_custom_call.1} parent=35 // pred_fallthru
          _
        %s333 = sand.u32 %s54, 1
        %s334 = scalar_lea.sflag [#allocation5], %s333
        %s335 = sand.u32 %s54, 1
        %s336 = smul.addr %s335, 64
        %s337 = scalar_lea.vmem [#allocation4], %s336
        %p338 = pneg %p67
        %p339 = pneg %p64
        %s340 = sand.u32 %s32, 1
        %s341 = scalar_lea.sflag [#allocation8], %s340
        %s342 = sand.u32 %s82, 1
        %s343 = smul.addr %s342, 64
        %s344 = scalar_lea.vmem [#allocation7], %s343
        %p345 = pneg %p95
        %p346 = pneg %p92
        %s347 = sand.u32 %s32, 1
        %s348 = scalar_lea.sflag [#allocation8], %s347
        %s349 = sand.u32 %s110, 1
        %s350 = smul.addr %s349, 64
        %s351 = scalar_lea.vmem [#allocation9], %s350
        %p352 = pneg %p123
        %p353 = pneg %p120
        %s354 = sand.u32 %s138, 1
        %s355 = scalar_lea.sflag [#allocation11], %s354
        %s356 = sand.u32 %s138, 1
        %s357 = smul.addr %s356, 64
        %s358 = scalar_lea.vmem [#allocation10], %s357
        %p359 = pneg %p151
        %p360 = pneg %p148
        %p361 = pneg %p179
        %p362 = pneg %p176
        %s363 = sand.u32 %s166, 1
        %s364 = scalar_lea.sflag [#allocation6], %s363
        %s365 = sand.u32 %s166, 1
        %s366 = smul.addr %s365, 64
        %s367 = scalar_lea.vmem [#allocation12], %s366
        %s368 = smul.u32 2, %s37
        %s369 = smul.u32 2, %s37
        %s370 = smul.u32 2, %s37
        %s371 = smul.u32 2, %s37
        %s372 = smul.u32 2, %s37
        %s373 = sld [smem:[#allocation3]]
        %v374 = vld [vmem:[%s301] sm:$0xff]
        %v375 = vld [vmem:[%s301 + $0x8] sm:$0xff]
        %v376 = vld [vmem:[%s301 + $0x10] sm:$0xff]
        %v377 = vld [vmem:[%s301 + $0x18] sm:$0xff]
        %v378 = vld [vmem:[%s301 + $0x20] sm:$0xff]
        %v379 = vld [vmem:[%s301 + $0x28] sm:$0xff]
        %v380 = vld [vmem:[%s301 + $0x30] sm:$0xff]
        %v381 = vld [vmem:[%s301 + $0x38] sm:$0xff]
        %v382 = vstv %s373
        %v383 = vmul.f32 %v382, %v374
        %v384 = vmul.f32 %v382, %v375
        %v385 = vmul.f32 %v382, %v376
        %v386 = vmul.f32 %v382, %v377
        %v387 = vmul.f32 %v382, %v378
        %v388 = vmul.f32 %v382, %v379
        %v389 = vmul.f32 %v382, %v380
        %v390 = vmul.f32 %v382, %v381
        %s391 = sld [smem:[#allocation3 + $0x1]]
        %v392 = vld [vmem:[%s310] sm:$0xff]
        %v393 = vld [vmem:[%s310 + $0x8] sm:$0xff]
        %v394 = vld [vmem:[%s310 + $0x10] sm:$0xff]
        %v395 = vld [vmem:[%s310 + $0x18] sm:$0xff]
        %v396 = vld [vmem:[%s310 + $0x20] sm:$0xff]
        %v397 = vld [vmem:[%s310 + $0x28] sm:$0xff]
        %v398 = vld [vmem:[%s310 + $0x30] sm:$0xff]
        %v399 = vld [vmem:[%s310 + $0x38] sm:$0xff]
        %v400 = vstv %s391
        %v401 = vmul.f32 %v400, %v392
        %v402 = vmul.f32 %v400, %v393
        %v403 = vmul.f32 %v400, %v394
        %v404 = vmul.f32 %v400, %v395
        %v405 = vmul.f32 %v400, %v396
        %v406 = vmul.f32 %v400, %v397
        %v407 = vmul.f32 %v400, %v398
        %v408 = vmul.f32 %v400, %v399
        %v409 = vadd.f32 %v383, %v401
        %v410 = vadd.f32 %v384, %v402
        %v411 = vadd.f32 %v385, %v403
        %v412 = vadd.f32 %v386, %v404
        %v413 = vadd.f32 %v387, %v405
        %v414 = vadd.f32 %v388, %v406
        %v415 = vadd.f32 %v389, %v407
        %v416 = vadd.f32 %v390, %v408
        %s417 = sld [smem:[#allocation3 + $0x2]]
        %v418 = vld [vmem:[%s319] sm:$0xff]
        %v419 = vld [vmem:[%s319 + $0x8] sm:$0xff]
        %v420 = vld [vmem:[%s319 + $0x10] sm:$0xff]
        %v421 = vld [vmem:[%s319 + $0x18] sm:$0xff]
        %v422 = vld [vmem:[%s319 + $0x20] sm:$0xff]
        %v423 = vld [vmem:[%s319 + $0x28] sm:$0xff]
        %v424 = vld [vmem:[%s319 + $0x30] sm:$0xff]
        %v425 = vld [vmem:[%s319 + $0x38] sm:$0xff]
        %v426 = vstv %s417
        %v427 = vmul.f32 %v426, %v418
        %v428 = vmul.f32 %v426, %v419
        %v429 = vmul.f32 %v426, %v420
        %v430 = vmul.f32 %v426, %v421
        %v431 = vmul.f32 %v426, %v422
        %v432 = vmul.f32 %v426, %v423
        %v433 = vmul.f32 %v426, %v424
        %v434 = vmul.f32 %v426, %v425
        %v435 = vadd.f32 %v409, %v427
        %v436 = vadd.f32 %v410, %v428
        %v437 = vadd.f32 %v411, %v429
        %v438 = vadd.f32 %v412, %v430
        %v439 = vadd.f32 %v413, %v431
        %v440 = vadd.f32 %v414, %v432
        %v441 = vadd.f32 %v415, %v433
        %v442 = vadd.f32 %v416, %v434
        %s443 = sld [smem:[#allocation3 + $0x3]]
        %v444 = vld [vmem:[%s328] sm:$0xff]
        %v445 = vld [vmem:[%s328 + $0x8] sm:$0xff]
        %v446 = vld [vmem:[%s328 + $0x10] sm:$0xff]
        %v447 = vld [vmem:[%s328 + $0x18] sm:$0xff]
        %v448 = vld [vmem:[%s328 + $0x20] sm:$0xff]
        %v449 = vld [vmem:[%s328 + $0x28] sm:$0xff]
        %v450 = vld [vmem:[%s328 + $0x30] sm:$0xff]
        %v451 = vld [vmem:[%s328 + $0x38] sm:$0xff]
        %v452 = vstv %s443
        %v453 = vmul.f32 %v452, %v444
        %v454 = vmul.f32 %v452, %v445
        %v455 = vmul.f32 %v452, %v446
        %v456 = vmul.f32 %v452, %v447
        %v457 = vmul.f32 %v452, %v448
        %v458 = vmul.f32 %v452, %v449
        %v459 = vmul.f32 %v452, %v450
        %v460 = vmul.f32 %v452, %v451
        %v461 = vadd.f32 %v435, %v453
        %v462 = vadd.f32 %v436, %v454
        %v463 = vadd.f32 %v437, %v455
        %v464 = vadd.f32 %v438, %v456
        %v465 = vadd.f32 %v439, %v457
        %v466 = vadd.f32 %v440, %v458
        %v467 = vadd.f32 %v441, %v459
        %v468 = vadd.f32 %v442, %v460
        %vm469 = vcmask 130048
        %470 = vst.msk [vmem:[%s367] sm:$0xff] %vm469, %v461
        %471 = vst.msk [vmem:[%s367 + $0x8] sm:$0xff] %vm469, %v462
        %472 = vst.msk [vmem:[%s367 + $0x10] sm:$0xff] %vm469, %v463
        %473 = vst.msk [vmem:[%s367 + $0x18] sm:$0xff] %vm469, %v464
        %474 = vst.msk [vmem:[%s367 + $0x20] sm:$0xff] %vm469, %v465
        %475 = vst.msk [vmem:[%s367 + $0x28] sm:$0xff] %vm469, %v466
        %476 = vst.msk [vmem:[%s367 + $0x30] sm:$0xff] %vm469, %v467
        %477 = vst.msk [vmem:[%s367 + $0x38] sm:$0xff] %vm469, %v468
        %s478 = sand.u32 %s166, 1
        %s479 = scalar_lea.sflag [#allocation6], %s478
        %s480 = sand.u32 %s166, 1
        %s481 = smul.addr %s480, 64
        %s482 = scalar_lea.vmem [#allocation12], %s481
        // Predicated region
        $region53: #{tpu_custom_call.1} parent=35 // pred_check
          %p483 = pneg %p176
        $region54: #{tpu_custom_call.1} parent=35 // pred_check_branch
          %485 = sbr.rel (%p483) target = $region56
        $region55: #{tpu_custom_call.1} parent=35 // pred_region
          %s486 = smul.u32 2, %s37
          %s488 = ssub.s32 1024, 1024
          %489 = vsyncadd %s479, %s488
          %s490 = smul.addr %s36, 8
          %s491 = sadd.s32 %s486, %s490
          %s492 = smul.addr %s491, 128
          %s493 = scalar_lea.hbm %s5, %s492
          %s494 = sshll.u32 %s482, 4
          %s495 = int_to_ptr.vmem [resolvable:$true] %s494
          %500 = dma.vmem_to_hbm [thread:$0]  %s495, 1024, %s493, %s479, 128, 128, 8
        $region56: #{tpu_custom_call.1} parent=35 // pred_fallthru
          _
      $region36: #{tpu_custom_call.1} parent=5 // pred_fallthru
        _
      %p501 = scmp.le.s32.totalorder 2, %s27
      // Predicated region
      $region57: #{tpu_custom_call.1} parent=5 // pred_check
        %p502 = pneg %p501
      $region58: #{tpu_custom_call.1} parent=5 // pred_check_branch
        %504 = sbr.rel (%p502) target = $region60
      $region59: #{tpu_custom_call.1} parent=5 // pred_region
        %s505 = ssub.s32 %s27, 2
        // Predicated region
        $region61: #{tpu_custom_call.1} parent=59 // pred_check
          %p506 = pneg %p182
        $region62: #{tpu_custom_call.1} parent=59 // pred_check_branch
          %508 = sbr.rel (%p506) target = $region64
        $region63: #{tpu_custom_call.1} parent=59 // pred_region
          %s509 = sand.u32 %s167, 1
          %s510 = scalar_lea.sflag [#allocation6], %s509
          %s511 = sand.u32 %s167, 1
          %s512 = smul.addr %s511, 64
          %s513 = scalar_lea.vmem [#allocation12], %s512
          %514 = dma.done %s510, 1024
        $region64: #{tpu_custom_call.1} parent=59 // pred_fallthru
          _
      $region60: #{tpu_custom_call.1} parent=5 // pred_fallthru
        _
    $region6: #{tpu_custom_call.1} parent=1 // loop_footer
      %s31 = sadd.s32 1, %s27
    $region7: #{tpu_custom_call.1} parent=1 // loop_footer_branch
      %26 = sbr.rel target = $region3
    $region8: #{tpu_custom_call.1} parent=1 // loop_exit
      _
    %515 = vsyncpa [#allocation5], 1
    %s516 = scalar_lea.sflag [#allocation5], 1
    %517 = vsyncpa %s516, 1
    %518 = vsyncpa [#allocation8], 1
    %s519 = scalar_lea.sflag [#allocation8], 1
    %520 = vsyncpa %s519, 1
    %521 = vsyncpa [#allocation11], 1
    %s522 = scalar_lea.sflag [#allocation11], 1
    %523 = vsyncpa %s522, 1
    %524 = vsyncpa [#allocation6], 1
    %s525 = scalar_lea.sflag [#allocation6], 1
    %526 = vsyncpa %s525, 1

</llo_original>
